<compile_context>
chip_gen: v7x
topology: tpu7x:2x2x1
jax: 0.10.0
libtpu: 0.0.40
codegen_flags: <defaults>
</compile_context>

<pallas_src>
import enum
import functools

import numpy as np
import jax
import jax.numpy as jnp
from jax.experimental import pallas as pl
from jax.experimental.pallas import tpu as pltpu

FINITE_DIFFERENCES_COEFFICIENTS = {
    'FORWARD': {1: {1: (-1, 1), 2: (-3 / 2, 2, -1 / 2)},
                2: {1: (1, -2, 1), 2: (2, -5, 4, -1)}},
    'BACKWARD': {1: {1: (1, -1), 2: (3 / 2, -2, 1 / 2)},
                 2: {1: (1, -2, 1), 2: (2, -5, 4, -1)}},
    'CENTRAL': {1: {2: (-1 / 2, 0, 1 / 2), 4: (1 / 12, -2 / 3, 0, 2 / 3, -1 / 12)},
                2: {2: (1, -2, 1), 4: (-1 / 12, 4 / 3, -5 / 2, 4 / 3, -1 / 12)}},
}


class Axis(enum.Enum):
    X = 1
    Y = 0


class FiniteDifferencesMethod(enum.Enum):
    FORWARD = 1
    BACKWARD = 2
    CENTRAL = 3


def _vmem_capacity_bytes() -> int:
    """Physical VMEM of the local chip; safe fallback if the query fails."""
    try:
        return int(pltpu.get_tpu_info().vmem_capacity_bytes)
    except Exception:
        return 128 << 20  # v5e / v6e


def _roll(u, shift, axis):
    """Circular roll matching np.roll / torch.roll (positive shift -> higher idx).

    Uses the XLU rotate (pltpu.roll, separate VLIW slot from the VPU mul/adds)
    for (8,128)-aligned 32-bit tiles; falls back to jnp.roll (slice+concat)
    otherwise.  `shift` is a static non-negative Python int (< axis extent).
    """
    if shift == 0:
        return u
    if (u.dtype.itemsize == 4
            and u.shape[-2] % 8 == 0 and u.shape[-1] % 128 == 0):
        return pltpu.roll(u, shift, axis)
    # TODO(synk): extend the pltpu.roll path to packed (bf16) and ragged-lane
    # tiles once the rotate lowering is verified for those layouts.
    return jnp.roll(u, shift, axis)


def _build_plan(shifts, coeffs):
    """Fold symmetric/antisymmetric tap pairs: [(coeff, ((shift, sign), ...))]."""
    taps = {}
    for s, c in zip(shifts, coeffs):
        if c != 0:
            # NOTE: dropping 0-coefficient taps skips 0*roll(u); differs from
            # PyTorch only if u contains Inf/NaN.
            taps[s] = c
    plan = []
    done = set()
    for s in sorted(taps, key=abs):
        if s in done:
            continue
        c = taps[s]
        if s != 0 and -s in taps and -s not in done:
            c2 = taps[-s]
            if c2 == c:
                plan.append((c, ((s, +1), (-s, +1))))   # even-derivative pair
                done.update((s, -s))
                continue
            if c2 == -c:
                plan.append((c, ((s, +1), (-s, -1))))   # odd-derivative pair
                done.update((s, -s))
                continue
        plan.append((c, ((s, +1),)))
        done.add(s)
    return tuple(plan)


def _fd_kernel(u_ref, out_ref, *, plan, axis, extent):
    """derivative = sum_k c_k * roll(u, s_k, axis) on one tile (folded taps)."""
    u = u_ref[...]                       # native dtype: rolls are pure data movement
    acc = None
    for c, taps in plan:
        inner = None
        for s, sign in taps:
            r = _roll(u, s % extent, axis).astype(jnp.float32)
            r = -r if sign < 0 else r
            inner = r if inner is None else inner + r
        term = jnp.float32(c) * inner    # promote-at-multiply; one mul per pair
        acc = term if acc is None else acc + term
    if acc is None:                      # all-zero stencil (never with the table)
        acc = jnp.zeros(u.shape, jnp.float32)
    out_ref[...] = acc.astype(out_ref.dtype)


def _pick_tile(dim, rolled_dim, itemsize, unit, vmem_cap, small_bytes=1 << 20):
    """Tile size (elements, multiple of `unit`) along the non-rolled axis.

    Per-step VMEM budget ~ VMEM/2: 4 pipelined I/O buffers in the I/O dtype
    plus ~6 f32 compute temporaries of the same block.  Fields above
    `small_bytes` always get >= 2 grid steps (v7x megacore sharding).
    """
    if dim * rolled_dim * itemsize <= small_bytes or dim <= unit:
        return int(dim)                                  # tiny field: one block
    budget_elems = (vmem_cap // 2) // (4 * itemsize + 24)
    t = max((budget_elems // max(rolled_dim, 1)) // unit * unit, unit)
    half = (dim // 2) // unit * unit                     # guarantee >= 2 steps
    if half >= unit:
        t = min(t, half)
    return int(min(t, ((dim + unit - 1) // unit) * unit))


class FiniteDifferences:
    """JAX/Pallas port of the PyTorch FiniteDifferences module."""

    def __init__(self, method: FiniteDifferencesMethod,
                 derivative_order: int, accuracy_order: int):
        self.method = method
        self.coefficients = tuple(
            FINITE_DIFFERENCES_COEFFICIENTS[method.name][derivative_order][accuracy_order]
        )
        self._plan = _build_plan(self._shifts(), self.coefficients)

    def _shifts(self):
        n = len(self.coefficients)
        if self.method is FiniteDifferencesMethod.FORWARD:
            return tuple(-s for s in range(n))          # torch.roll(u, -shift)
        if self.method is FiniteDifferencesMethod.BACKWARD:
            return tuple(range(n))                      # torch.roll(u, +shift)
        return tuple(range(-(n // 2), n // 2 + 1))      # CENTRAL stencil

    def __call__(self, u: jax.Array, axis: Axis, *, tile: int | None = None) -> jax.Array:
        assert u.ndim == 2, "layout: u is (H, W)"
        H, W = u.shape
        ax = axis.value
        itemsize = np.dtype(u.dtype).itemsize           # pipeline buffers hold I/O dtype
        vmem_cap = _vmem_capacity_bytes()

        if ax == 1:
            # d/dx: block carries full W (lanes); tile rows (multiples of 8).
            tile_h = tile if tile is not None else _pick_tile(H, W, itemsize, 8, vmem_cap)
            block = (tile_h, W)
            grid = (pl.cdiv(H, tile_h),)
            index_map = lambda i: (i, 0)
            extent = W
        else:
            # d/dy: block carries full H; lane-dense column tiles (multiples of 128
            # -> unmasked vst on interior tiles).
            tile_w = tile if tile is not None else _pick_tile(W, H, itemsize, 128, vmem_cap)
            block = (H, tile_w)
            grid = (pl.cdiv(W, tile_w),)
            index_map = lambda i: (0, i)
            extent = H

        # Explicit VMEM ceiling: ~5/8 of physical, raised adaptively when the
        # rolled extent forces a larger-than-budget minimum block.
        block_elems = block[0] * block[1]
        est_bytes = 4 * block_elems * itemsize + 6 * block_elems * 4 + (2 << 20)
        vmem_limit = int(min(vmem_cap * 3 // 4, max((vmem_cap * 5) // 8, est_bytes)))

        n_taps = sum(1 for c in self.coefficients if c != 0)
        cost = pl.CostEstimate(flops=2 * H * W * n_taps, transcendentals=0,
                               bytes_accessed=2 * H * W * itemsize)

        kernel = functools.partial(_fd_kernel, plan=self._plan, axis=ax, extent=extent)

        return pl.pallas_call(
            kernel,
            out_shape=jax.ShapeDtypeStruct((H, W), u.dtype),
            grid=grid,
            in_specs=[pl.BlockSpec(block, index_map)],
            out_specs=pl.BlockSpec(block, index_map),
            compiler_params=pltpu.CompilerParams(
                dimension_semantics=("parallel",),
                vmem_limit_bytes=vmem_limit,
            ),
            cost_estimate=cost,
        )(u)


def _reference(u_np, method, coeffs, axis):
    """NumPy reference mirroring the PyTorch forward (np.roll == torch.roll)."""
    d = np.zeros_like(u_np)
    if method is FiniteDifferencesMethod.FORWARD:
        for shift, c in enumerate(coeffs):
            d += c * np.roll(u_np, -shift, axis=axis)
    elif method is FiniteDifferencesMethod.BACKWARD:
        for shift, c in enumerate(coeffs):
            d += c * np.roll(u_np, shift, axis=axis)
    else:
        stencil = np.arange(-(len(coeffs) // 2), len(coeffs) // 2 + 1)
        for shift, c in zip(stencil, coeffs):
            d += c * np.roll(u_np, shift, axis=axis)
    return d


if __name__ == "__main__":
    key = jax.random.PRNGKey(0)

    configs = [
        (FiniteDifferencesMethod.CENTRAL, 1, 2, Axis.X),
        (FiniteDifferencesMethod.CENTRAL, 1, 4, Axis.X),
        (FiniteDifferencesMethod.CENTRAL, 2, 4, Axis.Y),
        (FiniteDifferencesMethod.FORWARD, 1, 1, Axis.X),
        (FiniteDifferencesMethod.FORWARD, 1, 2, Axis.Y),
        (FiniteDifferencesMethod.BACKWARD, 2, 2, Axis.Y),
    ]

    # (8,128)-aligned f32 field: exercises the pltpu.roll (XLU) path with both
    # the auto-picked block and explicit multi-tile grids.
    u_a = jax.random.normal(key, (48, 256), dtype=jnp.float32)
    u_a_np = np.asarray(u_a)
    # Unaligned f32 field: partial last blocks and the jnp.roll fallback.
    u_b = jax.random.normal(jax.random.PRNGKey(1), (40, 320), dtype=jnp.float32)
    u_b_np = np.asarray(u_b)

    for method, d_order, a_order, axis in configs:
        fd = FiniteDifferences(method, d_order, a_order)

        # Default (auto) tiling.
        out = jax.block_until_ready(fd(u_a, axis))
        ref = _reference(u_a_np, method, fd.coefficients, axis.value)
        np.testing.assert_allclose(np.asarray(out), ref, rtol=1e-5, atol=1e-5)

        # Explicit small tiles -> grid > 1, tests the pipelined path.
        tile = 16 if axis is Axis.X else 128
        out_t = jax.block_until_ready(fd(u_a, axis, tile=tile))
        np.testing.assert_allclose(np.asarray(out_t), ref, rtol=1e-5, atol=1e-5)

        # Unaligned shapes with partial last blocks.
        out_u = jax.block_until_ready(fd(u_b, axis, tile=tile))
        ref_u = _reference(u_b_np, method, fd.coefficients, axis.value)
        np.testing.assert_allclose(np.asarray(out_u), ref_u, rtol=1e-5, atol=1e-5)

    # bf16 field: native-dtype rolls, promote-to-f32 at the coefficient multiply.
    fd_bf = FiniteDifferences(FiniteDifferencesMethod.CENTRAL, 1, 4)
    u_c = u_a.astype(jnp.bfloat16)
    out_bf = jax.block_until_ready(fd_bf(u_c, Axis.X))
    ref_bf = _reference(np.asarray(u_c.astype(jnp.float32)),
                        FiniteDifferencesMethod.CENTRAL, fd_bf.coefficients, Axis.X.value)
    np.testing.assert_allclose(np.asarray(out_bf.astype(jnp.float32)), ref_bf,
                               rtol=2e-2, atol=5e-2)

    print("KERNEL_OK")
</pallas_src>

<mosaic_0001>
module attributes {stable_mosaic.version = 11 : i64} {
  func.func @_fd_kernel(%arg0: i32, %arg1: memref<48x256xf32, #tpu.memory_space<vmem>>, %arg2: memref<48x256xf32, #tpu.memory_space<vmem>>) attributes {dimension_semantics = [#tpu.dimension_semantics<parallel>], iteration_bounds = array<i64: 1>, scalar_prefetch = 0 : i64, scratch_operands = 0 : i64, tpu.core_type = #tpu.core_type<tc>, window_params = [{transform_indices = @transform_0, window_bounds = array<i64: 48, 256>}, {transform_indices = @transform_1, window_bounds = array<i64: 48, 256>}]} {
    %c0 = arith.constant 0 : index
    %c0_0 = arith.constant 0 : index
    %0 = vector.load %arg1[%c0, %c0_0] : memref<48x256xf32, #tpu.memory_space<vmem>>, vector<48x256xf32>
    %c255_i32 = arith.constant 255 : i32
    %1 = tpu.dynamic_rotate %0 by %c255_i32 dim 1 : vector<48x256xf32>, i32 -> vector<48x256xf32>
    %c1_i32 = arith.constant 1 : i32
    %2 = tpu.dynamic_rotate %0 by %c1_i32 dim 1 : vector<48x256xf32>, i32 -> vector<48x256xf32>
    %cst = arith.constant 0.000000e+00 : f32
    %3 = vector.broadcast %cst : f32 to vector<48x256xf32>
    %4 = arith.subf %3, %2 : vector<48x256xf32>
    %5 = arith.addf %1, %4 : vector<48x256xf32>
    %cst_1 = arith.constant -5.000000e-01 : f32
    %6 = vector.broadcast %cst_1 : f32 to vector<48x256xf32>
    %7 = arith.mulf %6, %5 : vector<48x256xf32>
    %c0_2 = arith.constant 0 : index
    %c0_3 = arith.constant 0 : index
    %8 = vector.load %arg2[%c0_2, %c0_3] : memref<48x256xf32, #tpu.memory_space<vmem>>, vector<48x256xf32>
    tpu.vector_store %arg2[%c0_2, %c0_3], %7 {strides = array<i32>} : memref<48x256xf32, #tpu.memory_space<vmem>>, vector<48x256xf32>,
    return
  }
  func.func @transform_0(%arg0: i32) -> (i32, i32) {
    %c0_i32 = arith.constant 0 : i32
    %c0_i32_0 = arith.constant 0 : i32
    return %arg0, %c0_i32 : i32, i32
  }
  func.func @transform_1(%arg0: i32) -> (i32, i32) {
    %c0_i32 = arith.constant 0 : i32
    %c0_i32_0 = arith.constant 0 : i32
    return %arg0, %c0_i32 : i32, i32
  }
}

</mosaic_0001>

<llo_original>
// kernel: tpu_custom_call.1
$region0: #{tpu_custom_call.1}
  #allocation0 [shape = 'u32[]', space=smem, size = 0x4, offset = 0x4, fixed_abs, tag = 'smem constant byte address 0x4 - core index']
  #allocation1 [shape = 'u32[144,128]{1,0:T(1,128)}', space=vmem, size = 0x12000, scoped, tag = 'internal scratch']
  %s0 = inlined_call_operand.hbm [shape: f32[48,256], index: 0, kind: input, shape index: {}]
  %s1 = inlined_call_operand.hbm [shape: f32[48,256], index: 1, kind: output, shape index: {}]
  %s2 = sld [smem:[#allocation0]]
  $region18: #{tpu_custom_call.1} parent=0
    _
  %s4 = ssub.s32 1, %s2
  %s5 = scalar_select 0, %s4, %s2
  $region1: #{tpu_custom_call.1} parent=0
    #allocation2 [shape = 'u8[49152]{0}', space=vmem, size = 0xc000, scoped, tag = 'input window, operand 0, single buffered']
    #allocation3 [shape = 's32[1]{0}', space=sflag, size = 0x4, scoped, tag = 'scoped memory for tpu_custom_call.1']
    #allocation4 [shape = 's32[1]{0}', space=sflag, size = 0x4, scoped, tag = 'scoped memory for tpu_custom_call.1']
    #allocation5 [shape = 'u8[49152]{0}', space=vmem, size = 0xc000, scoped, tag = 'output window, operand 0, single buffered']
    %6 = vsyncpa [#allocation3], 0
    %7 = vsyncpa [#allocation4], 0
    // Predicated region
    $region2: #{tpu_custom_call.1} parent=1 // pred_check
      _
    $region3: #{tpu_custom_call.1} parent=1 // pred_check_branch
      %9 = sbr.rel (0) target = $region5
    $region4: #{tpu_custom_call.1} parent=1 // pred_region
      %s11 = ssub.s32 1536, 1536
      %12 = vsyncadd [#allocation3], %s11
      %s13 = sshll.u32 [#allocation2], 4
      %s14 = int_to_ptr.vmem [resolvable:$true] %s13
      %19 = dma.hbm_to_vmem [thread:$0]  %s0, 1536, %s14, [#allocation3], 256, 256, 16
    $region5: #{tpu_custom_call.1} parent=1 // pred_fallthru
      _
    // Predicated region
    $region6: #{tpu_custom_call.1} parent=1 // pred_check
      _
    $region7: #{tpu_custom_call.1} parent=1 // pred_check_branch
      %21 = sbr.rel (0) target = $region9
    $region8: #{tpu_custom_call.1} parent=1 // pred_region
      %22 = dma.done [#allocation3], 1536
    $region9: #{tpu_custom_call.1} parent=1 // pred_fallthru
      _
    %v23 = vld [vmem:[#allocation2] sm:$0xff]
    %v24 = vld [vmem:[#allocation2 + $0x8] sm:$0xff]
    %v25 = vld [vmem:[#allocation2 + $0x10] sm:$0xff]
    %v26 = vld [vmem:[#allocation2 + $0x18] sm:$0xff]
    %v27 = vld [vmem:[#allocation2 + $0x20] sm:$0xff]
    %v28 = vld [vmem:[#allocation2 + $0x28] sm:$0xff]
    %v29 = vld [vmem:[#allocation2 + $0x30] sm:$0xff]
    %v30 = vld [vmem:[#allocation2 + $0x38] sm:$0xff]
    %v31 = vld [vmem:[#allocation2 + $0x40] sm:$0xff]
    %v32 = vld [vmem:[#allocation2 + $0x48] sm:$0xff]
    %v33 = vld [vmem:[#allocation2 + $0x50] sm:$0xff]
    %v34 = vld [vmem:[#allocation2 + $0x58] sm:$0xff]
    %35 = vrot.lane.b32.xlu0 %v23, 127
    %v36 = vpop.permute.xlu0 %35
    %37 = vrot.lane.b32.xlu0 %v25, 127
    %v38 = vpop.permute.xlu0 %37
    %39 = vrot.lane.b32.xlu0 %v27, 127
    %v40 = vpop.permute.xlu0 %39
    %41 = vrot.lane.b32.xlu0 %v29, 127
    %v42 = vpop.permute.xlu0 %41
    %43 = vrot.lane.b32.xlu0 %v31, 127
    %v44 = vpop.permute.xlu0 %43
    %45 = vrot.lane.b32.xlu0 %v33, 127
    %v46 = vpop.permute.xlu0 %45
    %47 = vrot.lane.b32.xlu0 %v24, 127
    %v48 = vpop.permute.xlu0 %47
    %49 = vrot.lane.b32.xlu0 %v26, 127
    %v50 = vpop.permute.xlu0 %49
    %51 = vrot.lane.b32.xlu0 %v28, 127
    %v52 = vpop.permute.xlu0 %51
    %53 = vrot.lane.b32.xlu0 %v30, 127
    %v54 = vpop.permute.xlu0 %53
    %55 = vrot.lane.b32.xlu0 %v32, 127
    %v56 = vpop.permute.xlu0 %55
    %57 = vrot.lane.b32.xlu0 %v34, 127
    %v58 = vpop.permute.xlu0 %57
    %v59 = vlaneseq
    %v60 = vand.u32 %v59, 127
    %vm61 = vcmp.lt.s32.totalorder %v60, 127
    %v62 = vsel %vm61, %v36, %v48
    %v63 = vsel %vm61, %v38, %v50
    %v64 = vsel %vm61, %v40, %v52
    %v65 = vsel %vm61, %v42, %v54
    %v66 = vsel %vm61, %v44, %v56
    %v67 = vsel %vm61, %v46, %v58
    %v68 = vsel %vm61, %v48, %v36
    %v69 = vsel %vm61, %v50, %v38
    %v70 = vsel %vm61, %v52, %v40
    %v71 = vsel %vm61, %v54, %v42
    %v72 = vsel %vm61, %v56, %v44
    %v73 = vsel %vm61, %v58, %v46
    %74 = vrot.lane.b32.xlu0 %v23, 1
    %v75 = vpop.permute.xlu0 %74
    %76 = vrot.lane.b32.xlu0 %v25, 1
    %v77 = vpop.permute.xlu0 %76
    %78 = vrot.lane.b32.xlu0 %v27, 1
    %v79 = vpop.permute.xlu0 %78
    %80 = vrot.lane.b32.xlu0 %v29, 1
    %v81 = vpop.permute.xlu0 %80
    %82 = vrot.lane.b32.xlu0 %v31, 1
    %v83 = vpop.permute.xlu0 %82
    %84 = vrot.lane.b32.xlu0 %v33, 1
    %v85 = vpop.permute.xlu0 %84
    %86 = vrot.lane.b32.xlu0 %v24, 1
    %v87 = vpop.permute.xlu0 %86
    %88 = vrot.lane.b32.xlu0 %v26, 1
    %v89 = vpop.permute.xlu0 %88
    %90 = vrot.lane.b32.xlu0 %v28, 1
    %v91 = vpop.permute.xlu0 %90
    %92 = vrot.lane.b32.xlu0 %v30, 1
    %v93 = vpop.permute.xlu0 %92
    %94 = vrot.lane.b32.xlu0 %v32, 1
    %v95 = vpop.permute.xlu0 %94
    %96 = vrot.lane.b32.xlu0 %v34, 1
    %v97 = vpop.permute.xlu0 %96
    %vm98 = vcmp.lt.s32.totalorder %v60, 1
    %v99 = vsel %vm98, %v75, %v87
    %v100 = vsel %vm98, %v77, %v89
    %v101 = vsel %vm98, %v79, %v91
    %v102 = vsel %vm98, %v81, %v93
    %v103 = vsel %vm98, %v83, %v95
    %v104 = vsel %vm98, %v85, %v97
    %v105 = vsel %vm98, %v87, %v75
    %v106 = vsel %vm98, %v89, %v77
    %v107 = vsel %vm98, %v91, %v79
    %v108 = vsel %vm98, %v93, %v81
    %v109 = vsel %vm98, %v95, %v83
    %v110 = vsel %vm98, %v97, %v85
    %v111 = vsub.f32 0.0, %v105
    %v112 = vsub.f32 0.0, %v99
    %v113 = vsub.f32 0.0, %v106
    %v114 = vsub.f32 0.0, %v100
    %v115 = vsub.f32 0.0, %v107
    %v116 = vsub.f32 0.0, %v101
    %v117 = vsub.f32 0.0, %v108
    %v118 = vsub.f32 0.0, %v102
    %v119 = vsub.f32 0.0, %v109
    %v120 = vsub.f32 0.0, %v103
    %v121 = vsub.f32 0.0, %v110
    %v122 = vsub.f32 0.0, %v104
    %v123 = vadd.f32 %v62, %v111
    %v124 = vadd.f32 %v68, %v112
    %v125 = vadd.f32 %v63, %v113
    %v126 = vadd.f32 %v69, %v114
    %v127 = vadd.f32 %v64, %v115
    %v128 = vadd.f32 %v70, %v116
    %v129 = vadd.f32 %v65, %v117
    %v130 = vadd.f32 %v71, %v118
    %v131 = vadd.f32 %v66, %v119
    %v132 = vadd.f32 %v72, %v120
    %v133 = vadd.f32 %v67, %v121
    %v134 = vadd.f32 %v73, %v122
    %v135 = vmul.f32 %v123, -0.5
    %v136 = vmul.f32 %v124, -0.5
    %v137 = vmul.f32 %v125, -0.5
    %v138 = vmul.f32 %v126, -0.5
    %v139 = vmul.f32 %v127, -0.5
    %v140 = vmul.f32 %v128, -0.5
    %v141 = vmul.f32 %v129, -0.5
    %v142 = vmul.f32 %v130, -0.5
    %v143 = vmul.f32 %v131, -0.5
    %v144 = vmul.f32 %v132, -0.5
    %v145 = vmul.f32 %v133, -0.5
    %v146 = vmul.f32 %v134, -0.5
    %147 = vst [vmem:[#allocation5] sm:$0xff] %v135
    %148 = vst [vmem:[#allocation5 + $0x8] sm:$0xff] %v136
    %149 = vst [vmem:[#allocation5 + $0x10] sm:$0xff] %v137
    %150 = vst [vmem:[#allocation5 + $0x18] sm:$0xff] %v138
    %151 = vst [vmem:[#allocation5 + $0x20] sm:$0xff] %v139
    %152 = vst [vmem:[#allocation5 + $0x28] sm:$0xff] %v140
    %153 = vst [vmem:[#allocation5 + $0x30] sm:$0xff] %v141
    %154 = vst [vmem:[#allocation5 + $0x38] sm:$0xff] %v142
    %155 = vst [vmem:[#allocation5 + $0x40] sm:$0xff] %v143
    %156 = vst [vmem:[#allocation5 + $0x48] sm:$0xff] %v144
    %157 = vst [vmem:[#allocation5 + $0x50] sm:$0xff] %v145
    %158 = vst [vmem:[#allocation5 + $0x58] sm:$0xff] %v146
    // Predicated region
    $region10: #{tpu_custom_call.1} parent=1 // pred_check
      _
    $region11: #{tpu_custom_call.1} parent=1 // pred_check_branch
      %160 = sbr.rel (0) target = $region13
    $region12: #{tpu_custom_call.1} parent=1 // pred_region
      %s162 = ssub.s32 1536, 1536
      %163 = vsyncadd [#allocation4], %s162
      %s164 = sshll.u32 [#allocation5], 4
      %s165 = int_to_ptr.vmem [resolvable:$true] %s164
      %170 = dma.vmem_to_hbm [thread:$0]  %s165, 1536, %s1, [#allocation4], 256, 256, 16
    $region13: #{tpu_custom_call.1} parent=1 // pred_fallthru
      _
    // Predicated region
    $region14: #{tpu_custom_call.1} parent=1 // pred_check
      _
    $region15: #{tpu_custom_call.1} parent=1 // pred_check_branch
      %172 = sbr.rel (0) target = $region17
    $region16: #{tpu_custom_call.1} parent=1 // pred_region
      %173 = dma.done [#allocation4], 1536
    $region17: #{tpu_custom_call.1} parent=1 // pred_fallthru
      _
    %174 = vsyncpa [#allocation3], 1
    %175 = vsyncpa [#allocation4], 1

</llo_original>
